<compile_context>
chip_gen: v5e
topology: v5e:2x2
jax: 0.10.0
libtpu: 0.0.40
codegen_flags: <defaults>
</compile_context>

<pallas_src>
import functools

import jax
import jax.numpy as jnp
from jax.experimental import pallas as pl
from jax.experimental.pallas import tpu as pltpu

HIDDEN1 = 128
HIDDEN2 = 64
OUT_DIM = 1

# Contract the last dim of both operands: (1, K) x (block_b, K) -> (1, block_b).
_TRANS_B_DIM_NUMBERS = (((1,), (1,)), ((), ()))


def _mlp_kernel(x_ref, w1_ref, b1_ref, w2_ref, b2_ref, w3_ref, b3_ref, o_ref):
    # Layer 1 (MXU): (block_b, F) @ (F, 128), f32 accumulation.
    h1 = jnp.dot(x_ref[...], w1_ref[...], preferred_element_type=jnp.float32)
    h1 = jnp.maximum(h1 + b1_ref[...], 0.0)

    # Layer 2 (MXU): (block_b, 128) @ (128, 64).
    h2 = jnp.dot(h1, w2_ref[...], preferred_element_type=jnp.float32)
    h2 = jnp.maximum(h2 + b2_ref[...], 0.0)

    # Layer 3: OUT_DIM == 1, computed transposed:
    #   (1, 64) contracted with (block_b, 64) on the 64-dim -> (1, block_b),
    # the lane-dense row we store directly (no N=1 MXU column, no masked stores).
    # Same contraction pattern as q@k^T in attention kernels (no explicit XLU
    # transpose expected; verify with pl.lower_as_mlir if tiles grow very large).
    z = jax.lax.dot_general(w3_ref[...], h2, _TRANS_B_DIM_NUMBERS,
                            preferred_element_type=jnp.float32)
    z = z + b3_ref[0]  # scalar bias read from SMEM
    o_ref[...] = jax.nn.sigmoid(z).astype(o_ref.dtype)


def _round_up(x, m):
    return ((x + m - 1) // m) * m


def _cdiv(a, b):
    return -(-a // b)


def _vmem_limit_bytes():
    """Generation-aware scoped-VMEM limit: ~3/4 of physical, capped at 96 MiB."""
    try:
        cap = int(pltpu.get_tpu_info().vmem_capacity_bytes)
    except Exception:
        cap = 64 * 1024 * 1024  # v7x-safe fallback
    return int(min(96 * 1024 * 1024, (cap * 3) // 4))


def _choose_block_b(B, F, feat_itemsize, vmem_limit):
    """Pick a batch tile: ~2 MiB feature tiles, clamped to the VMEM budget, with an
    even number of grid steps (v7x megacore balance) when there is more than one."""
    B8 = _round_up(B, 8)
    if B8 <= 256:
        # Tiny batch: single grid step.
        return B8

    # Resident weights/biases are double-buffered by the constant-index BlockSpecs.
    weight_bytes = 2 * (F * HIDDEN1 * feat_itemsize
                        + 4 * (HIDDEN1 * HIDDEN2 + HIDDEN1 + 2 * HIDDEN2 + 1))
    budget = vmem_limit - weight_bytes - 6 * 1024 * 1024  # Mosaic scratch headroom
    # Per batch-row: up-to-3-buffered feature tile + f32 h1/h2 temps + 2x out row.
    per_row = 3 * F * feat_itemsize + 4 * (HIDDEN1 + HIDDEN2) + 2 * 4
    cap = (budget // per_row) // 128 * 128 if budget > 0 else 0
    cap = max(128, cap)

    # Target >= ~2 MiB feature tiles so DMA amortizes the per-step overhead.
    target = max(128, ((2 << 20) // max(1, F * feat_itemsize)) // 128 * 128)

    blk = max(128, min(target, cap, _round_up(B8, 128)))

    # v7x: keep the number of grid steps even so both TensorCores get equal work.
    nb = _cdiv(B8, blk)
    if nb >= 2 and nb % 2 == 1:
        blk_even = _round_up(_cdiv(B8, nb + 1), 128)
        if blk_even >= 128 and _cdiv(B8, blk_even) % 2 == 0:
            blk = blk_even
    return blk


def _feature_spec(block_b, F, multi_buffer):
    index_map = lambda i: (i, 0)
    if multi_buffer:
        try:
            # Deeper pipeline for the (DMA-bound) feature stream.
            return pl.BlockSpec((block_b, F), index_map, pipeline_mode=pl.Buffered(3))
        except TypeError:
            pass  # older jax: fall back to default double-buffering
    return pl.BlockSpec((block_b, F), index_map)


@functools.partial(jax.jit, static_argnames=("block_b",))
def constraint_network_forward(features, params, *, block_b=None):
    """features: (B, feature_dim), f32 or bf16.  params: dict of (in, out) weights
    and (1, out) biases.  Returns sigmoid(relu(relu(x@w1+b1)@w2+b2)@w3+b3), (B, 1) f32.
    """
    B, F = features.shape

    w1, b1 = params["w1"], params["b1"]
    w2, b2 = params["w2"], params["b2"]
    w3, b3 = params["w3"], params["b3"]

    # If the caller already stores features in bf16, match w1 (tiny, resident) so the
    # HBM feature read is halved.  f32 features stay f32 end-to-end: no wrapper-side
    # cast pass (that would add a full extra read+write over the features).
    if features.dtype == jnp.bfloat16:
        w1 = w1.astype(jnp.bfloat16)

    w3_row = w3.reshape(1, HIDDEN2)                 # (64, 1) -> (1, 64) row for layer 3
    b3_s = b3.reshape((1,)).astype(jnp.float32)     # SMEM scalar

    vmem_limit = _vmem_limit_bytes()
    if block_b is None:
        block_b = _choose_block_b(B, F, features.dtype.itemsize, vmem_limit)
    else:
        assert block_b % 8 == 0, "block_b must be a multiple of 8 (sublanes)"
    num_blocks = _cdiv(B, block_b)

    # No jnp.pad: the grid over-covers the ragged last block.  Out-of-bounds rows hold
    # unspecified data; their output lanes are discarded by the [:B] slice below.
    feat_tile_bytes = block_b * F * features.dtype.itemsize
    multi_buffer = (num_blocks >= 3) and (feat_tile_bytes >= (1 << 20))
    feat_spec = _feature_spec(block_b, F, multi_buffer)

    cost = pl.CostEstimate(
        flops=2 * B * (F * HIDDEN1 + HIDDEN1 * HIDDEN2 + HIDDEN2),
        transcendentals=2 * B,  # sigmoid ~ exp + reciprocal per row
        bytes_accessed=(B * F * features.dtype.itemsize
                        + F * HIDDEN1 * w1.dtype.itemsize
                        + 4 * (HIDDEN1 * HIDDEN2 + HIDDEN1 + 2 * HIDDEN2 + 1)
                        + num_blocks * block_b * 4),
    )

    const_spec = lambda shape: pl.BlockSpec(shape, lambda i: (0, 0))

    out = pl.pallas_call(
        _mlp_kernel,
        out_shape=jax.ShapeDtypeStruct((num_blocks, 1, block_b), jnp.float32),
        grid_spec=pltpu.PrefetchScalarGridSpec(
            num_scalar_prefetch=0,
            grid=(num_blocks,),
            in_specs=[
                feat_spec,                                          # feature tile (pipelined)
                const_spec((F, HIDDEN1)),                           # w1 (resident)
                const_spec((1, HIDDEN1)),                           # b1
                const_spec((HIDDEN1, HIDDEN2)),                     # w2
                const_spec((1, HIDDEN2)),                           # b2
                const_spec((1, HIDDEN2)),                           # w3 as a row
                pl.BlockSpec(memory_space=pltpu.MemorySpace.SMEM),  # b3 scalar
            ],
            # Lane-dense output: one (1, block_b) row per grid step.
            out_specs=pl.BlockSpec((None, 1, block_b), lambda i: (i, 0, 0)),
        ),
        compiler_params=pltpu.CompilerParams(
            dimension_semantics=("parallel",),
            vmem_limit_bytes=vmem_limit,
        ),
        cost_estimate=cost,
    )(features, w1, b1, w2, b2, w3_row, b3_s)

    # (num_blocks, 1, block_b) -> (B, 1), dropping lanes from the ragged last block.
    return out.reshape(-1)[:B].reshape(B, OUT_DIM)


def init_params(key, feature_dim):
    """Deterministic init mimicking nn.Linear's default U(-1/sqrt(fan_in), 1/sqrt(fan_in))."""
    def linear(k, fan_in, fan_out):
        k_w, k_b = jax.random.split(k)
        bound = 1.0 / jnp.sqrt(fan_in)
        # Stored as (in, out) so the forward does x @ W  (== PyTorch x @ W.T).
        w = jax.random.uniform(k_w, (fan_in, fan_out), jnp.float32, -bound, bound)
        b = jax.random.uniform(k_b, (1, fan_out), jnp.float32, -bound, bound)
        return w, b

    k1, k2, k3 = jax.random.split(key, 3)
    w1, b1 = linear(k1, feature_dim, HIDDEN1)
    w2, b2 = linear(k2, HIDDEN1, HIDDEN2)
    w3, b3 = linear(k3, HIDDEN2, OUT_DIM)
    return {"w1": w1, "b1": b1, "w2": w2, "b2": b2, "w3": w3, "b3": b3}


def reference_forward(features, params):
    h1 = jax.nn.relu(features @ params["w1"] + params["b1"])
    h2 = jax.nn.relu(h1 @ params["w2"] + params["b2"])
    return jax.nn.sigmoid(h2 @ params["w3"] + params["b3"])


if __name__ == "__main__":
    key = jax.random.PRNGKey(0)
    k_params, k_x = jax.random.split(key)

    batch, feature_dim = 8, 32
    params = init_params(k_params, feature_dim)
    features = jax.random.normal(k_x, (batch, feature_dim), jnp.float32)

    out = jax.block_until_ready(constraint_network_forward(features, params))
    ref = reference_forward(features, params)
    assert out.shape == (batch, OUT_DIM)
    assert jnp.allclose(out, ref, atol=1e-5, rtol=1e-5)

    # Ragged batch, explicit small tile: multi-step grid + ragged (unpadded) last block.
    batch2 = 1000
    feats2 = jax.random.normal(jax.random.PRNGKey(1), (batch2, feature_dim), jnp.float32)
    out2 = jax.block_until_ready(constraint_network_forward(feats2, params, block_b=128))
    ref2 = reference_forward(feats2, params)
    assert out2.shape == (batch2, OUT_DIM)
    assert jnp.allclose(out2, ref2, atol=1e-5, rtol=1e-5)

    # Auto tiling on the same ragged batch (single large tile, no padding pass).
    out2b = jax.block_until_ready(constraint_network_forward(feats2, params))
    assert jnp.allclose(out2b, ref2, atol=1e-5, rtol=1e-5)

    # Large batch: exercises ~2 MiB tiles, even grid-step balancing, Buffered(3),
    # and the ragged last block.
    batch3 = 40000
    feats3 = jax.random.normal(jax.random.PRNGKey(2), (batch3, feature_dim), jnp.float32)
    out3 = jax.block_until_ready(constraint_network_forward(feats3, params))
    ref3 = reference_forward(feats3, params)
    assert out3.shape == (batch3, OUT_DIM)
    assert jnp.allclose(out3, ref3, atol=1e-5, rtol=1e-5)

    # Features "born" bf16: only w1 is matched in-kernel; looser tolerance.
    feats_bf16 = feats2.astype(jnp.bfloat16)
    out_bf16 = jax.block_until_ready(constraint_network_forward(feats_bf16, params))
    ref_bf16 = reference_forward(feats_bf16.astype(jnp.float32), params)
    assert jnp.allclose(out_bf16, ref_bf16, atol=5e-2, rtol=5e-2)

    print("KERNEL_OK")
</pallas_src>

<mosaic_0001>
module attributes {stable_mosaic.version = 11 : i64} {
  func.func @_mlp_kernel(%arg0: i32, %arg1: memref<8x32xf32, #tpu.memory_space<vmem>>, %arg2: memref<32x128xf32, #tpu.memory_space<vmem>>, %arg3: memref<1x128xf32, #tpu.memory_space<vmem>>, %arg4: memref<128x64xf32, #tpu.memory_space<vmem>>, %arg5: memref<1x64xf32, #tpu.memory_space<vmem>>, %arg6: memref<1x64xf32, #tpu.memory_space<vmem>>, %arg7: memref<1xf32, #tpu.memory_space<smem>>, %arg8: memref<1x1x8xf32, #tpu.memory_space<vmem>>) attributes {dimension_semantics = [#tpu.dimension_semantics<parallel>], iteration_bounds = array<i64: 1>, scalar_prefetch = 0 : i64, scratch_operands = 0 : i64, tpu.core_type = #tpu.core_type<tc>, window_params = [{transform_indices = @transform_0, window_bounds = array<i64: 8, 32>}, {pipeline_mode = #tpu.pipeline_mode<synchronous>, transform_indices = @transform_1, window_bounds = array<i64: 32, 128>}, {pipeline_mode = #tpu.pipeline_mode<synchronous>, transform_indices = @transform_2, window_bounds = array<i64: 1, 128>}, {pipeline_mode = #tpu.pipeline_mode<synchronous>, transform_indices = @transform_3, window_bounds = array<i64: 128, 64>}, {pipeline_mode = #tpu.pipeline_mode<synchronous>, transform_indices = @transform_4, window_bounds = array<i64: 1, 64>}, {pipeline_mode = #tpu.pipeline_mode<synchronous>, transform_indices = @transform_5, window_bounds = array<i64: 1, 64>}, {transform_indices = @transform_6, window_bounds = array<i64: 1>}, {transform_indices = @transform_7, window_bounds = array<i64: 1, 1, 8>}]} {
    %c0 = arith.constant 0 : index
    %c0_0 = arith.constant 0 : index
    %0 = vector.load %arg1[%c0, %c0_0] : memref<8x32xf32, #tpu.memory_space<vmem>>, vector<8x32xf32>
    %c0_1 = arith.constant 0 : index
    %c0_2 = arith.constant 0 : index
    %1 = vector.load %arg2[%c0_1, %c0_2] : memref<32x128xf32, #tpu.memory_space<vmem>>, vector<32x128xf32>
    %cst = arith.constant dense<0.000000e+00> : vector<8x128xf32>
    %2 = tpu.matmul %0, %1, %cst {dimension_numbers = #tpu.dot_dimension_numbers<[1], [0], [0], [1], [0, 0, 1, 1], [], []>} : vector<8x32xf32>, vector<32x128xf32>, vector<8x128xf32> -> vector<8x128xf32>
    %c0_3 = arith.constant 0 : index
    %c0_4 = arith.constant 0 : index
    %3 = vector.load %arg3[%c0_3, %c0_4] : memref<1x128xf32, #tpu.memory_space<vmem>>, vector<1x128xf32>
    %4 = vector.broadcast %3 : vector<1x128xf32> to vector<8x128xf32>
    %5 = arith.addf %2, %4 : vector<8x128xf32>
    %cst_5 = arith.constant 0.000000e+00 : f32
    %6 = vector.broadcast %cst_5 : f32 to vector<8x128xf32>
    %7 = arith.maximumf %5, %6 : vector<8x128xf32>
    %c0_6 = arith.constant 0 : index
    %c0_7 = arith.constant 0 : index
    %8 = vector.load %arg4[%c0_6, %c0_7] : memref<128x64xf32, #tpu.memory_space<vmem>>, vector<128x64xf32>
    %cst_8 = arith.constant dense<0.000000e+00> : vector<8x64xf32>
    %9 = tpu.matmul %7, %8, %cst_8 {dimension_numbers = #tpu.dot_dimension_numbers<[1], [0], [0], [1], [0, 0, 1, 1], [], []>} : vector<8x128xf32>, vector<128x64xf32>, vector<8x64xf32> -> vector<8x64xf32>
    %c0_9 = arith.constant 0 : index
    %c0_10 = arith.constant 0 : index
    %10 = vector.load %arg5[%c0_9, %c0_10] : memref<1x64xf32, #tpu.memory_space<vmem>>, vector<1x64xf32>
    %11 = vector.broadcast %10 : vector<1x64xf32> to vector<8x64xf32>
    %12 = arith.addf %9, %11 : vector<8x64xf32>
    %cst_11 = arith.constant 0.000000e+00 : f32
    %13 = vector.broadcast %cst_11 : f32 to vector<8x64xf32>
    %14 = arith.maximumf %12, %13 : vector<8x64xf32>
    %c0_12 = arith.constant 0 : index
    %c0_13 = arith.constant 0 : index
    %15 = vector.load %arg6[%c0_12, %c0_13] : memref<1x64xf32, #tpu.memory_space<vmem>>, vector<1x64xf32>
    %cst_14 = arith.constant dense<0.000000e+00> : vector<1x8xf32>
    %16 = tpu.matmul %15, %14, %cst_14 {dimension_numbers = #tpu.dot_dimension_numbers<[1], [1], [0], [0], [0, 0, 1, 0], [], []>} : vector<1x64xf32>, vector<8x64xf32>, vector<1x8xf32> -> vector<1x8xf32>
    %c0_15 = arith.constant 0 : index
    %17 = memref.load %arg7[%c0_15] : memref<1xf32, #tpu.memory_space<smem>>
    %18 = vector.broadcast %17 : f32 to vector<1x8xf32>
    %19 = arith.addf %16, %18 : vector<1x8xf32>
    %20 = arith.negf %19 : vector<1x8xf32>
    %21 = math.exp %20 : vector<1x8xf32>
    %cst_16 = arith.constant 1.000000e+00 : f32
    %22 = vector.broadcast %cst_16 : f32 to vector<1x8xf32>
    %23 = arith.addf %22, %21 : vector<1x8xf32>
    %24 = arith.divf %22, %23 : vector<1x8xf32>
    %c0_17 = arith.constant 0 : index
    %c0_18 = arith.constant 0 : index
    %c0_19 = arith.constant 0 : index
    %25 = vector.load %arg8[%c0_17, %c0_18, %c0_19] : memref<1x1x8xf32, #tpu.memory_space<vmem>>, vector<1x1x8xf32>
    %26 = vector.shape_cast %25 : vector<1x1x8xf32> to vector<1x8xf32>
    %27 = vector.shape_cast %24 : vector<1x8xf32> to vector<1x1x8xf32>
    tpu.vector_store %arg8[%c0_17, %c0_18, %c0_19], %27 {strides = array<i32>} : memref<1x1x8xf32, #tpu.memory_space<vmem>>, vector<1x1x8xf32>,
    return
  }
  func.func @transform_0(%arg0: i32) -> (i32, i32) {
    %c0_i32 = arith.constant 0 : i32
    %c0_i32_0 = arith.constant 0 : i32
    return %arg0, %c0_i32 : i32, i32
  }
  func.func @transform_1(%arg0: i32) -> (i32, i32) {
    %c0_i32 = arith.constant 0 : i32
    %c0_i32_0 = arith.constant 0 : i32
    %c0_i32_1 = arith.constant 0 : i32
    return %c0_i32, %c0_i32_0 : i32, i32
  }
  func.func @transform_2(%arg0: i32) -> (i32, i32) {
    %c0_i32 = arith.constant 0 : i32
    %c0_i32_0 = arith.constant 0 : i32
    %c0_i32_1 = arith.constant 0 : i32
    return %c0_i32, %c0_i32_0 : i32, i32
  }
  func.func @transform_3(%arg0: i32) -> (i32, i32) {
    %c0_i32 = arith.constant 0 : i32
    %c0_i32_0 = arith.constant 0 : i32
    %c0_i32_1 = arith.constant 0 : i32
    return %c0_i32, %c0_i32_0 : i32, i32
  }
  func.func @transform_4(%arg0: i32) -> (i32, i32) {
    %c0_i32 = arith.constant 0 : i32
    %c0_i32_0 = arith.constant 0 : i32
    %c0_i32_1 = arith.constant 0 : i32
    return %c0_i32, %c0_i32_0 : i32, i32
  }
  func.func @transform_5(%arg0: i32) -> (i32, i32) {
    %c0_i32 = arith.constant 0 : i32
    %c0_i32_0 = arith.constant 0 : i32
    %c0_i32_1 = arith.constant 0 : i32
    return %c0_i32, %c0_i32_0 : i32, i32
  }
  func.func @transform_6(%arg0: i32) -> i32 {
    %c0_i32 = arith.constant 0 : i32
    %c0_i32_0 = arith.constant 0 : i32
    return %c0_i32 : i32
  }
  func.func @transform_7(%arg0: i32) -> (i32, i32, i32) {
    %c0_i32 = arith.constant 0 : i32
    %c0_i32_0 = arith.constant 0 : i32
    %c0_i32_1 = arith.constant 0 : i32
    return %arg0, %c0_i32, %c0_i32_0 : i32, i32, i32
  }
}

</mosaic_0001>

<llo_original>
// kernel: constraint_network_forward.1
$region0: #{constraint_network_forward.1}
  #allocation0 [shape = 'u32[]', space=smem, size = 0x4, offset = 0x4, fixed_abs, tag = 'smem constant byte address 0x4 - core index']
  #allocation1 [shape = 'u32[72,128]{1,0:T(1,128)}', space=vmem, size = 0x9000, scoped, tag = 'internal scratch']
  #allocation2 [shape = 'f32[1]{0:T(128)S(6)}', space=smem, size = 0x200, scoped, tag = 'scoped memory for constraint_network_forward.1']
  %s0 = inlined_call_operand.vmem [shape: f32[8,32], index: 0, kind: input, shape index: {}]
  %s1 = inlined_call_operand.vmem [shape: f32[32,128], index: 1, kind: input, shape index: {}]
  %s2 = inlined_call_operand.vmem [shape: f32[1,128], index: 2, kind: input, shape index: {}]
  %s3 = inlined_call_operand.vmem [shape: f32[128,64], index: 3, kind: input, shape index: {}]
  %s4 = inlined_call_operand.vmem [shape: f32[1,64], index: 4, kind: input, shape index: {}]
  %s5 = inlined_call_operand.vmem [shape: f32[1,64], index: 5, kind: input, shape index: {}]
  %s6 = inlined_call_operand.<no memory space> [shape: f32[1], index: 6, kind: input, shape index: {}]
  %s7 = inlined_call_operand.hbm [shape: f32[1,1,8], index: 7, kind: output, shape index: {}]
  %s8 = sld [smem:[#allocation0]]
  $region38: #{constraint_network_forward.1} parent=0
    _
  %s10 = ssub.s32 1, %s8
  %s11 = scalar_select 0, %s10, %s8
  %12 = sst [smem:[#allocation2]] %s6
  $region1: #{constraint_network_forward.1} parent=0
    #allocation3 [shape = 'u8[512]{0}', space=vmem, size = 0x400, scoped, tag = 'output window, operand 0, single buffered']
    #allocation4 [shape = 's32[1]{0}', space=sflag, size = 0x4, scoped, tag = 'scoped memory for constraint_network_forward.1']
    %13 = vsyncpa [#allocation4], 0
    // Predicated region
    $region2: #{constraint_network_forward.1} parent=1 // pred_check
      _
    $region3: #{constraint_network_forward.1} parent=1 // pred_check_branch
      %15 = sbr.rel (0) target = $region5
    $region4: #{constraint_network_forward.1} parent=1 // pred_region
      _
    $region5: #{constraint_network_forward.1} parent=1 // pred_fallthru
      _
    // Predicated region
    $region6: #{constraint_network_forward.1} parent=1 // pred_check
      _
    $region7: #{constraint_network_forward.1} parent=1 // pred_check_branch
      %17 = sbr.rel (0) target = $region9
    $region8: #{constraint_network_forward.1} parent=1 // pred_region
      _
    $region9: #{constraint_network_forward.1} parent=1 // pred_fallthru
      _
    // Predicated region
    $region10: #{constraint_network_forward.1} parent=1 // pred_check
      _
    $region11: #{constraint_network_forward.1} parent=1 // pred_check_branch
      %19 = sbr.rel (0) target = $region13
    $region12: #{constraint_network_forward.1} parent=1 // pred_region
      _
    $region13: #{constraint_network_forward.1} parent=1 // pred_fallthru
      _
    // Predicated region
    $region14: #{constraint_network_forward.1} parent=1 // pred_check
      _
    $region15: #{constraint_network_forward.1} parent=1 // pred_check_branch
      %21 = sbr.rel (0) target = $region17
    $region16: #{constraint_network_forward.1} parent=1 // pred_region
      _
    $region17: #{constraint_network_forward.1} parent=1 // pred_fallthru
      _
    // Predicated region
    $region18: #{constraint_network_forward.1} parent=1 // pred_check
      _
    $region19: #{constraint_network_forward.1} parent=1 // pred_check_branch
      %23 = sbr.rel (0) target = $region21
    $region20: #{constraint_network_forward.1} parent=1 // pred_region
      _
    $region21: #{constraint_network_forward.1} parent=1 // pred_fallthru
      _
    // Predicated region
    $region22: #{constraint_network_forward.1} parent=1 // pred_check
      _
    $region23: #{constraint_network_forward.1} parent=1 // pred_check_branch
      %25 = sbr.rel (0) target = $region25
    $region24: #{constraint_network_forward.1} parent=1 // pred_region
      _
    $region25: #{constraint_network_forward.1} parent=1 // pred_fallthru
      _
    // Predicated region
    $region26: #{constraint_network_forward.1} parent=1 // pred_check
      _
    $region27: #{constraint_network_forward.1} parent=1 // pred_check_branch
      %27 = sbr.rel (0) target = $region29
    $region28: #{constraint_network_forward.1} parent=1 // pred_region
      _
    $region29: #{constraint_network_forward.1} parent=1 // pred_fallthru
      _
    %v28 = vld [vmem:[%s0] sm:$0xff]
    %v29 = vld [vmem:[%s1] sm:$0xff]
    %v30 = vld [vmem:[%s1 + $0x8] sm:$0xff]
    %v31 = vld [vmem:[%s1 + $0x10] sm:$0xff]
    %v32 = vld [vmem:[%s1 + $0x18] sm:$0xff]
    %v33 = vld [vmem:[%s2] sm:$0x1]
    %v35 = vperm.slane %v33, 0
    %vm37 = vcmask 261120
    %v39 = vsel %vm37, %v28, 0
    %41 = vmatpush.msra.mxu0 0.0
    %42 = vmatpush.msra.mxu0 0.0
    %43 = vmatpush.msra.mxu0 0.0
    %44 = vmatpush.msra.mxu0 0.0
    %45 = vmatpush.msra.mxu0 0.0
    %46 = vmatpush.msra.mxu0 0.0
    %47 = vmatpush.msra.mxu0 0.0
    %48 = vmatpush.msra.mxu0 0.0
    %49 = vmatpush.msra.mxu0 0.0
    %50 = vmatpush.msra.mxu0 0.0
    %51 = vmatpush.msra.mxu0 0.0
    %52 = vmatpush.msra.mxu0 0.0
    %53 = vmatpush.msra.mxu0 %v32
    %54 = vmatpush.msra.mxu0 %v31
    %55 = vmatpush.msra.mxu0 %v30
    %56 = vmatpush.msra.mxu0 %v29
    %57 = vmatmul.f32.gmra.mxu0 %v39
    %v58 = vpop.f32.mrf.mxu0
    %v59 = vadd.f32 %v35, %v58
    %60 = vdwg.mxu0
    %v61 = vmax.f32 %v59, 0.0
    %v62 = vld [vmem:[%s3] sm:$0xff]
    %v63 = vld [vmem:[%s3 + $0x8] sm:$0xff]
    %v64 = vld [vmem:[%s3 + $0x10] sm:$0xff]
    %v65 = vld [vmem:[%s3 + $0x18] sm:$0xff]
    %v66 = vld [vmem:[%s3 + $0x20] sm:$0xff]
    %v67 = vld [vmem:[%s3 + $0x28] sm:$0xff]
    %v68 = vld [vmem:[%s3 + $0x30] sm:$0xff]
    %v69 = vld [vmem:[%s3 + $0x38] sm:$0xff]
    %v70 = vld [vmem:[%s3 + $0x40] sm:$0xff]
    %v71 = vld [vmem:[%s3 + $0x48] sm:$0xff]
    %v72 = vld [vmem:[%s3 + $0x50] sm:$0xff]
    %v73 = vld [vmem:[%s3 + $0x58] sm:$0xff]
    %v74 = vld [vmem:[%s3 + $0x60] sm:$0xff]
    %v75 = vld [vmem:[%s3 + $0x68] sm:$0xff]
    %v76 = vld [vmem:[%s3 + $0x70] sm:$0xff]
    %v77 = vld [vmem:[%s3 + $0x78] sm:$0xff]
    %v78 = vld [vmem:[%s4] sm:$0x1]
    %v80 = vperm.slane %v78, 0
    %82 = vmatpush.msra.mxu0 %v77
    %83 = vmatpush.msra.mxu0 %v76
    %84 = vmatpush.msra.mxu0 %v75
    %85 = vmatpush.msra.mxu0 %v74
    %86 = vmatpush.msra.mxu0 %v73
    %87 = vmatpush.msra.mxu0 %v72
    %88 = vmatpush.msra.mxu0 %v71
    %89 = vmatpush.msra.mxu0 %v70
    %90 = vmatpush.msra.mxu0 %v69
    %91 = vmatpush.msra.mxu0 %v68
    %92 = vmatpush.msra.mxu0 %v67
    %93 = vmatpush.msra.mxu0 %v66
    %94 = vmatpush.msra.mxu0 %v65
    %95 = vmatpush.msra.mxu0 %v64
    %96 = vmatpush.msra.mxu0 %v63
    %97 = vmatpush.msra.mxu0 %v62
    %98 = vmatmul.f32.gmra.mxu0 %v61
    %v99 = vpop.f32.mrf.mxu0
    %v100 = vadd.f32 %v80, %v99
    %101 = vdwg.mxu0
    %v102 = vmax.f32 %v100, 0.0
    %v103 = vld [vmem:[%s5] sm:$0x1]
    %s104 = sld [smem:[#allocation2]]
    %v105 = vstv %s104
    %vm106 = vcmask 523264
    %v108 = vsel %vm106, %v103, 0
    %v111 = vsel %vm106, %v102, 0
    %113 = vmatpush.xpose.msra.mxu0 0.0
    %114 = vmatpush.xpose.msra.mxu0 0.0
    %115 = vmatpush.xpose.msra.mxu0 0.0
    %116 = vmatpush.xpose.msra.mxu0 0.0
    %117 = vmatpush.xpose.msra.mxu0 0.0
    %118 = vmatpush.xpose.msra.mxu0 0.0
    %119 = vmatpush.xpose.msra.mxu0 0.0
    %120 = vmatpush.xpose.msra.mxu0 0.0
    %121 = vmatpush.xpose.msra.mxu0 0.0
    %122 = vmatpush.xpose.msra.mxu0 0.0
    %123 = vmatpush.xpose.msra.mxu0 0.0
    %124 = vmatpush.xpose.msra.mxu0 0.0
    %125 = vmatpush.xpose.msra.mxu0 0.0
    %126 = vmatpush.xpose.msra.mxu0 0.0
    %127 = vmatpush.xpose.msra.mxu0 0.0
    %128 = vmatpush.xpose.msra.mxu0 %v111
    %129 = vmatmul.f32.gmra.mxu0 %v108
    %v130 = vpop.f32.mrf.mxu0
    %v131 = vadd.f32 %v105, %v130
    %132 = vdwg.mxu0
    %v133 = vxor.u32 %v131, 2147483648
    %v134 = vmul.f32 %v133, 1.442695
    %v135 = vpow.pop %v134
    %v136 = vadd.f32 %v135, 1.0
    %v137 = vrcp.pop %v136
    %v138 = vmul.f32 %v136, %v137
    %v139 = vsub.f32 1.0, %v138
    %v140 = vmul.f32 %v137, %v139
    %v141 = vadd.f32 %v137, %v140
    %vm142 = vweird.f32 %v136
    %vm143 = vweird.f32 %v137
    %vm144 = vmor %vm142, %vm143
    %v145 = vsel %vm144, %v137, %v141
    %v146 = vand.u32 2147483647, %v136
    %vm147 = vcmp.eq.f32.partialorder %v146, 8.507059e+37
    %v148 = vand.u32 %v136, 2147483648
    %v149 = vor.u32 1.1754944e-38, %v148
    %v150 = vsel %vm147, %v149, %v145
    %v151 = vmul.f32 1.0, %v150
    %vm152 = vcmask 57344
    %153 = vst.msk [vmem:[#allocation3] sm:$0x1] %vm152, %v151
    // Predicated region
    $region30: #{constraint_network_forward.1} parent=1 // pred_check
      _
    $region31: #{constraint_network_forward.1} parent=1 // pred_check_branch
      %155 = sbr.rel (0) target = $region33
    $region32: #{constraint_network_forward.1} parent=1 // pred_region
      %157 = vsyncadd [#allocation4], 0
      %s159 = sshll.u32 [#allocation3], 4
      %s160 = int_to_ptr.vmem [resolvable:$true] %s159
      %s161 = sshll.u32 %s7, 4
      %s162 = int_to_ptr.hbm [resolvable:$true] %s161
      %164 = dma.vmem_to_hbm [thread:$0]  %s160, 16, %s162, [#allocation4]
    $region33: #{constraint_network_forward.1} parent=1 // pred_fallthru
      _
    // Predicated region
    $region34: #{constraint_network_forward.1} parent=1 // pred_check
      _
    $region35: #{constraint_network_forward.1} parent=1 // pred_check_branch
      %166 = sbr.rel (0) target = $region37
    $region36: #{constraint_network_forward.1} parent=1 // pred_region
      %168 = dma.done [#allocation4], 16
    $region37: #{constraint_network_forward.1} parent=1 // pred_fallthru
      _
    %169 = vsyncpa [#allocation4], 1

</llo_original>
